<compile_context>
chip_gen: v5e
topology: v5e:2x2
jax: 0.10.0
libtpu: 0.0.40
codegen_flags: <defaults>
</compile_context>

<pallas_src>
import jax
import jax.numpy as jnp
from jax.experimental import pallas as pl
from jax.experimental.pallas import tpu as pltpu

_LANE = 128
_SUBLANE = 8


def _round_up(n, m):
    return ((n + m - 1) // m) * m


def _choose_tile_m(n_rows, cap=2048):
    """Row-tile heuristic: big tiles for HBM-roofline efficiency, but bound
    padded-tail waste and keep >=2 grid blocks when that costs nothing
    (feeds both TensorCores on v7x)."""
    rows8 = _round_up(max(n_rows, 1), _SUBLANE)
    tile = min(cap, rows8)
    # Bound padded-tail waste to ~10% of real rows.
    while tile > _SUBLANE and (_round_up(rows8, tile) - n_rows) * 10 > n_rows:
        tile = _round_up(tile // 2, _SUBLANE)
    # Split into 2 blocks when it adds no padding (v7x dual-TC occupancy).
    if (_round_up(rows8, tile) // tile < 2 and rows8 >= 2 * _SUBLANE
            and (rows8 // 2) % _SUBLANE == 0):
        tile = rows8 // 2
    return tile


def _mlp_kernel(x_ref, w1_ref, b1_ref, w2_ref, b2_ref, w3_ref, b3_ref, o_ref):
    # Layer 1: Linear + ReLU (bf16 MXU operands, f32 accumulation, f32 epilogue)
    h = jnp.dot(x_ref[...], w1_ref[...], preferred_element_type=jnp.float32)
    h = jnp.maximum(h + b1_ref[...], 0.0)
    # Layer 2: Linear + ReLU
    h = jnp.dot(h.astype(jnp.bfloat16), w2_ref[...],
                preferred_element_type=jnp.float32)
    h = jnp.maximum(h + b2_ref[...], 0.0)
    # Layer 3: Linear (output kept at true r_dim width; masked store is cheap)
    out = jnp.dot(h.astype(jnp.bfloat16), w3_ref[...],
                  preferred_element_type=jnp.float32)
    o_ref[...] = (out + b3_ref[...]).astype(o_ref.dtype)


def prepare_encoder_params(params, *, x_dim, y_dim, h_dim, r_dim):
    """One-time padding / bf16 cast of weights (hoisted out of the forward)."""
    w1, b1, w2, b2, w3, b3 = params
    in_dim = x_dim + y_dim
    h_pad = _round_up(h_dim, _LANE)

    def pad2(a, rows, cols):
        return jnp.pad(a, ((0, rows - a.shape[0]), (0, cols - a.shape[1])))

    w1p = pad2(w1, in_dim, h_pad).astype(jnp.bfloat16)
    w2p = pad2(w2, h_pad, h_pad).astype(jnp.bfloat16)
    w3p = pad2(w3, h_pad, r_dim).astype(jnp.bfloat16)   # N left at r_dim
    b1p = pad2(b1, 1, h_pad)     # biases stay f32 (added after f32 accumulation)
    b2p = pad2(b2, 1, h_pad)
    b3p = b3                     # (1, r_dim) f32
    return (w1p, b1p, w2p, b2p, w3p, b3p)


def encoder_forward(x, y, prepared_params, *, x_dim, y_dim, h_dim, r_dim,
                    tile_cap=2048):
    """Reproduces Encoder.forward.

    x : (batch, context, x_dim)
    y : (batch, context, y_dim)
    prepared_params : output of prepare_encoder_params
    returns (batch, context, r_dim)
    """
    assert x_dim == y_dim, (
        "Encoder's reshape(-1, x_dim + y_dim) after cat(dim=1) requires "
        "x_dim == y_dim")
    batch, context, _ = x.shape
    in_dim = x_dim + y_dim

    # Faithful to the module: cat along the context axis then flatten to rows
    # of length x_dim + y_dim.  Cast to bf16 here (fuses with the concat under
    # jit) -> halves the kernel's input DMA bytes.
    input_pairs = jnp.concatenate((x, y), axis=1).reshape(-1, in_dim)
    input_pairs = input_pairs.astype(jnp.bfloat16)
    n_rows = input_pairs.shape[0]

    w1p, b1p, w2p, b2p, w3p, b3p = prepared_params
    h_pad = w1p.shape[1]

    # Row tiling; pad the ragged tail so every grid step writes a full tile.
    tile_m = _choose_tile_m(n_rows, tile_cap)
    rows_pad = _round_up(n_rows, tile_m)
    if rows_pad != n_rows:
        input_pairs = jnp.pad(input_pairs, ((0, rows_pad - n_rows), (0, 0)))
    grid = (rows_pad // tile_m,)

    row_spec = pl.BlockSpec((tile_m, in_dim), lambda i: (i, 0))
    out_spec = pl.BlockSpec((tile_m, r_dim), lambda i: (i, 0))
    # Constant index_maps -> weights/biases VMEM-resident across the grid.
    w1_spec = pl.BlockSpec((in_dim, h_pad), lambda i: (0, 0))
    b1_spec = pl.BlockSpec((1, h_pad), lambda i: (0, 0))
    w2_spec = pl.BlockSpec((h_pad, h_pad), lambda i: (0, 0))
    b2_spec = pl.BlockSpec((1, h_pad), lambda i: (0, 0))
    w3_spec = pl.BlockSpec((h_pad, r_dim), lambda i: (0, 0))
    b3_spec = pl.BlockSpec((1, r_dim), lambda i: (0, 0))

    # Derive the VMEM budget from actual buffer sizes (double-buffered inputs/
    # outputs/weights + live f32 intermediates), clamp to v7x's 64 MiB physical.
    # TODO(synk): for h_dim >= ~4096 the double-buffered bf16 w2 alone exceeds
    # v7x's 64 MiB VMEM; add a K-reduction ("arbitrary") grid axis over layer 2
    # in that regime.
    w_bytes = ((w1p.size + w2p.size + w3p.size) * 2
               + (b1p.size + b2p.size + b3p.size) * 4)
    need = (2 * tile_m * in_dim * 2          # double-buffered bf16 input tile
            + 2 * tile_m * r_dim * 4         # double-buffered f32 output tile
            + 2 * w_bytes                    # weights/biases double-buffered
            + 3 * tile_m * h_pad * 4)        # f32 intermediates in the body
    vmem_limit = int(min(max(int(need * 1.5), 16 * 1024 * 1024),
                         64 * 1024 * 1024))

    flops = 2 * rows_pad * (in_dim * h_pad + h_pad * h_pad + h_pad * r_dim)
    bytes_accessed = (
        rows_pad * in_dim * 2 + rows_pad * r_dim * 4
        + (w1p.size + w2p.size + w3p.size) * 2
        + (b1p.size + b2p.size + b3p.size) * 4
    )

    out = pl.pallas_call(
        _mlp_kernel,
        out_shape=jax.ShapeDtypeStruct((rows_pad, r_dim), jnp.float32),
        grid=grid,
        in_specs=[row_spec, w1_spec, b1_spec, w2_spec, b2_spec,
                  w3_spec, b3_spec],
        out_specs=out_spec,
        compiler_params=pltpu.CompilerParams(
            dimension_semantics=("parallel",),
            vmem_limit_bytes=vmem_limit,
        ),
        cost_estimate=pl.CostEstimate(
            flops=flops, transcendentals=0, bytes_accessed=bytes_accessed),
    )(input_pairs, w1p, b1p, w2p, b2p, w3p, b3p)

    return out[:n_rows, :].reshape(batch, context, r_dim)


def init_encoder_params(key, x_dim, y_dim, h_dim, r_dim):
    """Deterministic init mimicking nn.Linear's U(-1/sqrt(fan_in), 1/sqrt(fan_in)).
    Weights are stored as (in_features, out_features)."""
    def linear(k, fan_in, fan_out):
        kw, kb = jax.random.split(k)
        bound = 1.0 / jnp.sqrt(fan_in)
        w = jax.random.uniform(kw, (fan_in, fan_out), jnp.float32, -bound, bound)
        b = jax.random.uniform(kb, (1, fan_out), jnp.float32, -bound, bound)
        return w, b

    k1, k2, k3 = jax.random.split(key, 3)
    w1, b1 = linear(k1, x_dim + y_dim, h_dim)
    w2, b2 = linear(k2, h_dim, h_dim)
    w3, b3 = linear(k3, h_dim, r_dim)
    return (w1, b1, w2, b2, w3, b3)


if __name__ == "__main__":
    # Small shapes consistent with the module's forward.
    batch, context = 2, 8
    x_dim, y_dim, h_dim, r_dim = 4, 4, 32, 16

    key = jax.random.PRNGKey(0)
    kx, ky, kp = jax.random.split(key, 3)

    x = jax.random.normal(kx, (batch, context, x_dim), jnp.float32)
    y = jax.random.normal(ky, (batch, context, y_dim), jnp.float32)
    params = init_encoder_params(kp, x_dim, y_dim, h_dim, r_dim)

    # One-time weight prep (hoisted out of the forward pass).
    prepared = prepare_encoder_params(params, x_dim=x_dim, y_dim=y_dim,
                                      h_dim=h_dim, r_dim=r_dim)

    out = encoder_forward(x, y, prepared, x_dim=x_dim, y_dim=y_dim,
                          h_dim=h_dim, r_dim=r_dim)
    out = jax.block_until_ready(out)

    # --- References ------------------------------------------------------
    ip = jnp.concatenate((x, y), axis=1).reshape(-1, x_dim + y_dim)
    w1, b1, w2, b2, w3, b3 = params

    # (1) bf16-operand / f32-accumulate mirror of the kernel's math (tight tol).
    def lin_bf16(a, w, b):
        return jnp.dot(a.astype(jnp.bfloat16), w.astype(jnp.bfloat16),
                       preferred_element_type=jnp.float32) + b

    ref_bf16 = jnp.maximum(lin_bf16(ip, w1, b1), 0.0)
    ref_bf16 = jnp.maximum(lin_bf16(ref_bf16, w2, b2), 0.0)
    ref_bf16 = lin_bf16(ref_bf16, w3, b3).reshape(batch, context, r_dim)

    # (2) true f32 reference (PyTorch nn.Linear parity) with loose tolerance.
    ref_f32 = jnp.maximum(ip @ w1 + b1, 0.0)
    ref_f32 = jnp.maximum(ref_f32 @ w2 + b2, 0.0)
    ref_f32 = (ref_f32 @ w3 + b3).reshape(batch, context, r_dim)

    assert out.shape == (batch, context, r_dim)
    assert jnp.allclose(out, ref_bf16, atol=1e-3, rtol=1e-3)
    assert jnp.allclose(out, ref_f32, atol=5e-2, rtol=5e-2)
    print("KERNEL_OK")
</pallas_src>

<mosaic_0001>
module attributes {stable_mosaic.version = 11 : i64} {
  func.func @_mlp_kernel(%arg0: i32, %arg1: memref<8x8xbf16, #tpu.memory_space<vmem>>, %arg2: memref<8x128xbf16, #tpu.memory_space<vmem>>, %arg3: memref<1x128xf32, #tpu.memory_space<vmem>>, %arg4: memref<128x128xbf16, #tpu.memory_space<vmem>>, %arg5: memref<1x128xf32, #tpu.memory_space<vmem>>, %arg6: memref<128x16xbf16, #tpu.memory_space<vmem>>, %arg7: memref<1x16xf32, #tpu.memory_space<vmem>>, %arg8: memref<8x16xf32, #tpu.memory_space<vmem>>) attributes {dimension_semantics = [#tpu.dimension_semantics<parallel>], iteration_bounds = array<i64: 2>, scalar_prefetch = 0 : i64, scratch_operands = 0 : i64, tpu.core_type = #tpu.core_type<tc>, window_params = [{transform_indices = @transform_0, window_bounds = array<i64: 8, 8>}, {pipeline_mode = #tpu.pipeline_mode<synchronous>, transform_indices = @transform_1, window_bounds = array<i64: 8, 128>}, {pipeline_mode = #tpu.pipeline_mode<synchronous>, transform_indices = @transform_2, window_bounds = array<i64: 1, 128>}, {pipeline_mode = #tpu.pipeline_mode<synchronous>, transform_indices = @transform_3, window_bounds = array<i64: 128, 128>}, {pipeline_mode = #tpu.pipeline_mode<synchronous>, transform_indices = @transform_4, window_bounds = array<i64: 1, 128>}, {pipeline_mode = #tpu.pipeline_mode<synchronous>, transform_indices = @transform_5, window_bounds = array<i64: 128, 16>}, {pipeline_mode = #tpu.pipeline_mode<synchronous>, transform_indices = @transform_6, window_bounds = array<i64: 1, 16>}, {transform_indices = @transform_7, window_bounds = array<i64: 8, 16>}]} {
    %c0 = arith.constant 0 : index
    %c0_0 = arith.constant 0 : index
    %0 = vector.load %arg1[%c0, %c0_0] : memref<8x8xbf16, #tpu.memory_space<vmem>>, vector<8x8xbf16>
    %c0_1 = arith.constant 0 : index
    %c0_2 = arith.constant 0 : index
    %1 = vector.load %arg2[%c0_1, %c0_2] : memref<8x128xbf16, #tpu.memory_space<vmem>>, vector<8x128xbf16>
    %cst = arith.constant dense<0.000000e+00> : vector<8x128xf32>
    %2 = tpu.matmul %0, %1, %cst {dimension_numbers = #tpu.dot_dimension_numbers<[1], [0], [0], [1], [0, 0, 1, 1], [], []>} : vector<8x8xbf16>, vector<8x128xbf16>, vector<8x128xf32> -> vector<8x128xf32>
    %c0_3 = arith.constant 0 : index
    %c0_4 = arith.constant 0 : index
    %3 = vector.load %arg3[%c0_3, %c0_4] : memref<1x128xf32, #tpu.memory_space<vmem>>, vector<1x128xf32>
    %4 = vector.broadcast %3 : vector<1x128xf32> to vector<8x128xf32>
    %5 = arith.addf %2, %4 : vector<8x128xf32>
    %cst_5 = arith.constant 0.000000e+00 : f32
    %6 = vector.broadcast %cst_5 : f32 to vector<8x128xf32>
    %7 = arith.maximumf %5, %6 : vector<8x128xf32>
    %8 = arith.truncf %7 : vector<8x128xf32> to vector<8x128xbf16>
    %c0_6 = arith.constant 0 : index
    %c0_7 = arith.constant 0 : index
    %9 = vector.load %arg4[%c0_6, %c0_7] : memref<128x128xbf16, #tpu.memory_space<vmem>>, vector<128x128xbf16>
    %cst_8 = arith.constant dense<0.000000e+00> : vector<8x128xf32>
    %10 = tpu.matmul %8, %9, %cst_8 {dimension_numbers = #tpu.dot_dimension_numbers<[1], [0], [0], [1], [0, 0, 1, 1], [], []>} : vector<8x128xbf16>, vector<128x128xbf16>, vector<8x128xf32> -> vector<8x128xf32>
    %c0_9 = arith.constant 0 : index
    %c0_10 = arith.constant 0 : index
    %11 = vector.load %arg5[%c0_9, %c0_10] : memref<1x128xf32, #tpu.memory_space<vmem>>, vector<1x128xf32>
    %12 = vector.broadcast %11 : vector<1x128xf32> to vector<8x128xf32>
    %13 = arith.addf %10, %12 : vector<8x128xf32>
    %cst_11 = arith.constant 0.000000e+00 : f32
    %14 = vector.broadcast %cst_11 : f32 to vector<8x128xf32>
    %15 = arith.maximumf %13, %14 : vector<8x128xf32>
    %16 = arith.truncf %15 : vector<8x128xf32> to vector<8x128xbf16>
    %c0_12 = arith.constant 0 : index
    %c0_13 = arith.constant 0 : index
    %17 = vector.load %arg6[%c0_12, %c0_13] : memref<128x16xbf16, #tpu.memory_space<vmem>>, vector<128x16xbf16>
    %cst_14 = arith.constant dense<0.000000e+00> : vector<8x16xf32>
    %18 = tpu.matmul %16, %17, %cst_14 {dimension_numbers = #tpu.dot_dimension_numbers<[1], [0], [0], [1], [0, 0, 1, 1], [], []>} : vector<8x128xbf16>, vector<128x16xbf16>, vector<8x16xf32> -> vector<8x16xf32>
    %c0_15 = arith.constant 0 : index
    %c0_16 = arith.constant 0 : index
    %19 = vector.load %arg7[%c0_15, %c0_16] : memref<1x16xf32, #tpu.memory_space<vmem>>, vector<1x16xf32>
    %20 = vector.broadcast %19 : vector<1x16xf32> to vector<8x16xf32>
    %21 = arith.addf %18, %20 : vector<8x16xf32>
    %c0_17 = arith.constant 0 : index
    %c0_18 = arith.constant 0 : index
    %22 = vector.load %arg8[%c0_17, %c0_18] : memref<8x16xf32, #tpu.memory_space<vmem>>, vector<8x16xf32>
    tpu.vector_store %arg8[%c0_17, %c0_18], %21 {strides = array<i32>} : memref<8x16xf32, #tpu.memory_space<vmem>>, vector<8x16xf32>,
    return
  }
  func.func @transform_0(%arg0: i32) -> (i32, i32) {
    %c0_i32 = arith.constant 0 : i32
    %c0_i32_0 = arith.constant 0 : i32
    return %arg0, %c0_i32 : i32, i32
  }
  func.func @transform_1(%arg0: i32) -> (i32, i32) {
    %c0_i32 = arith.constant 0 : i32
    %c0_i32_0 = arith.constant 0 : i32
    %c0_i32_1 = arith.constant 0 : i32
    return %c0_i32, %c0_i32_0 : i32, i32
  }
  func.func @transform_2(%arg0: i32) -> (i32, i32) {
    %c0_i32 = arith.constant 0 : i32
    %c0_i32_0 = arith.constant 0 : i32
    %c0_i32_1 = arith.constant 0 : i32
    return %c0_i32, %c0_i32_0 : i32, i32
  }
  func.func @transform_3(%arg0: i32) -> (i32, i32) {
    %c0_i32 = arith.constant 0 : i32
    %c0_i32_0 = arith.constant 0 : i32
    %c0_i32_1 = arith.constant 0 : i32
    return %c0_i32, %c0_i32_0 : i32, i32
  }
  func.func @transform_4(%arg0: i32) -> (i32, i32) {
    %c0_i32 = arith.constant 0 : i32
    %c0_i32_0 = arith.constant 0 : i32
    %c0_i32_1 = arith.constant 0 : i32
    return %c0_i32, %c0_i32_0 : i32, i32
  }
  func.func @transform_5(%arg0: i32) -> (i32, i32) {
    %c0_i32 = arith.constant 0 : i32
    %c0_i32_0 = arith.constant 0 : i32
    %c0_i32_1 = arith.constant 0 : i32
    return %c0_i32, %c0_i32_0 : i32, i32
  }
  func.func @transform_6(%arg0: i32) -> (i32, i32) {
    %c0_i32 = arith.constant 0 : i32
    %c0_i32_0 = arith.constant 0 : i32
    %c0_i32_1 = arith.constant 0 : i32
    return %c0_i32, %c0_i32_0 : i32, i32
  }
  func.func @transform_7(%arg0: i32) -> (i32, i32) {
    %c0_i32 = arith.constant 0 : i32
    %c0_i32_0 = arith.constant 0 : i32
    return %arg0, %c0_i32 : i32, i32
  }
}

</mosaic_0001>

<llo_original>
// kernel: tpu_custom_call.1
$region0: #{tpu_custom_call.1}
  #allocation0 [shape = 'u32[]', space=smem, size = 0x4, offset = 0x4, fixed_abs, tag = 'smem constant byte address 0x4 - core index']
  #allocation1 [shape = 'u32[72,128]{1,0:T(1,128)}', space=vmem, size = 0x9000, scoped, tag = 'internal scratch']
  %s0 = inlined_call_operand.vmem [shape: bf16[16,8], index: 0, kind: input, shape index: {}]
  %s1 = inlined_call_operand.vmem [shape: bf16[8,128], index: 1, kind: input, shape index: {}]
  %s2 = inlined_call_operand.vmem [shape: f32[1,128], index: 2, kind: input, shape index: {}]
  %s3 = inlined_call_operand.vmem [shape: bf16[128,128], index: 3, kind: input, shape index: {}]
  %s4 = inlined_call_operand.vmem [shape: f32[1,128], index: 4, kind: input, shape index: {}]
  %s5 = inlined_call_operand.vmem [shape: bf16[128,16], index: 5, kind: input, shape index: {}]
  %s6 = inlined_call_operand.vmem [shape: f32[1,16], index: 6, kind: input, shape index: {}]
  %s7 = inlined_call_operand.hbm [shape: f32[16,16], index: 7, kind: output, shape index: {}]
  %s8 = sld [smem:[#allocation0]]
  $region61: #{tpu_custom_call.1} parent=0
    _
  %s10 = ssub.s32 1, %s8
  %s11 = scalar_select 0, %s10, %s8
  $region1: #{tpu_custom_call.1} parent=0
    #allocation2 [shape = 'u8[8192]{0}', space=vmem, size = 0x2000, scoped, tag = 'output window, operand 0']
    #allocation3 [shape = 's32[2]{0}', space=sflag, size = 0x8, scoped, tag = 'scoped memory for tpu_custom_call.1']
    %12 = vsyncpa [#allocation3], 0
    %s13 = scalar_lea.sflag [#allocation3], 1
    %14 = vsyncpa %s13, 0
    loop: start=0, step=1, limit=4
    $region2: #{tpu_custom_call.1} parent=1 // loop_pre_header
      _
    $region3: #{tpu_custom_call.1} parent=1 // loop_header
      %s16 = sphi 0, %s20
      %p17 = scmp.ge.s32.totalorder %s16, 4
      %s26 = sphi 0, %s28
      %s29 = sphi 0, %s26
      %s30 = sphi 0, %s29
      %s46 = sphi 0, %s30
      %s50 = sphi 0, %s50
      %s52 = sphi 0, %s50
      %s53 = sphi 0, %s52
      %s67 = sphi 0, %s53
      %s71 = sphi 0, %s71
      %s73 = sphi 0, %s71
      %s74 = sphi 0, %s73
      %s88 = sphi 0, %s74
      %s92 = sphi 0, %s92
      %s94 = sphi 0, %s92
      %s95 = sphi 0, %s94
      %s109 = sphi 0, %s95
      %s113 = sphi 0, %s113
      %s115 = sphi 0, %s113
      %s116 = sphi 0, %s115
      %s130 = sphi 0, %s116
      %s134 = sphi 0, %s134
      %s136 = sphi 0, %s134
      %s137 = sphi 0, %s136
      %s151 = sphi 0, %s137
      %s155 = sphi 0, %s155
      %s157 = sphi 0, %s155
      %s158 = sphi 0, %s157
      %s172 = sphi 0, %s158
      %s178 = sphi 0, %s180
      %s181 = sphi 0, %s178
      %s182 = sphi 0, %s181
      %s198 = sphi 0, %s182
    $region4: #{tpu_custom_call.1} parent=1 // loop_header_branch
      %19 = sbr.rel (%p17) target = $region8
    $region5: #{tpu_custom_call.1} parent=1 // loop_body
      %s21 = ssub.s32 %s16, 1
      %s22 = ssub.s32 %s16, 2
      %s23 = sadd.s32 %s16, 1
      %s24 = ssub.s32 %s16, %s23
      %p25 = scmp.eq.s32.totalorder %s24, 0
      %s27 = sadd.s32 %s26, 1
      %s28 = scalar_select %p25, %s26, %s27
      %p31 = pneg %p25
      %p32 = scmp.eq.s32.totalorder %s16, 1
      %p33 = por %p31, %p32
      %p34 = scmp.ne.s32.totalorder %s26, %s29
      %p35 = scmp.eq.s32.totalorder %s16, 0
      %p36 = por %p34, %p35
      %p37 = scmp.ne.s32.totalorder %s26, %s29
      %p38 = scmp.eq.s32.totalorder %s21, 1
      %p39 = por %p37, %p38
      %p40 = scmp.ne.s32.totalorder %s29, %s30
      %p41 = scmp.eq.s32.totalorder %s21, 0
      %p42 = por %p40, %p41
      %p43 = scmp.ne.s32.totalorder %s29, %s30
      %p44 = scmp.eq.s32.totalorder %s22, 1
      %p45 = por %p43, %p44
      %p47 = scmp.ne.s32.totalorder %s30, %s46
      %p48 = scmp.eq.s32.totalorder %s22, 0
      %p49 = por %p47, %p48
      %s51 = sadd.s32 %s50, 1
      %p54 = scmp.eq.s32.totalorder %s16, 1
      %p55 = scmp.ne.s32.totalorder %s50, %s52
      %p56 = scmp.eq.s32.totalorder %s16, 0
      %p57 = por %p55, %p56
      %p58 = scmp.ne.s32.totalorder %s50, %s52
      %p59 = scmp.eq.s32.totalorder %s21, 1
      %p60 = por %p58, %p59
      %p61 = scmp.ne.s32.totalorder %s52, %s53
      %p62 = scmp.eq.s32.totalorder %s21, 0
      %p63 = por %p61, %p62
      %p64 = scmp.ne.s32.totalorder %s52, %s53
      %p65 = scmp.eq.s32.totalorder %s22, 1
      %p66 = por %p64, %p65
      %p68 = scmp.ne.s32.totalorder %s53, %s67
      %p69 = scmp.eq.s32.totalorder %s22, 0
      %p70 = por %p68, %p69
      %s72 = sadd.s32 %s71, 1
      %p75 = scmp.eq.s32.totalorder %s16, 1
      %p76 = scmp.ne.s32.totalorder %s71, %s73
      %p77 = scmp.eq.s32.totalorder %s16, 0
      %p78 = por %p76, %p77
      %p79 = scmp.ne.s32.totalorder %s71, %s73
      %p80 = scmp.eq.s32.totalorder %s21, 1
      %p81 = por %p79, %p80
      %p82 = scmp.ne.s32.totalorder %s73, %s74
      %p83 = scmp.eq.s32.totalorder %s21, 0
      %p84 = por %p82, %p83
      %p85 = scmp.ne.s32.totalorder %s73, %s74
      %p86 = scmp.eq.s32.totalorder %s22, 1
      %p87 = por %p85, %p86
      %p89 = scmp.ne.s32.totalorder %s74, %s88
      %p90 = scmp.eq.s32.totalorder %s22, 0
      %p91 = por %p89, %p90
      %s93 = sadd.s32 %s92, 1
      %p96 = scmp.eq.s32.totalorder %s16, 1
      %p97 = scmp.ne.s32.totalorder %s92, %s94
      %p98 = scmp.eq.s32.totalorder %s16, 0
      %p99 = por %p97, %p98
      %p100 = scmp.ne.s32.totalorder %s92, %s94
      %p101 = scmp.eq.s32.totalorder %s21, 1
      %p102 = por %p100, %p101
      %p103 = scmp.ne.s32.totalorder %s94, %s95
      %p104 = scmp.eq.s32.totalorder %s21, 0
      %p105 = por %p103, %p104
      %p106 = scmp.ne.s32.totalorder %s94, %s95
      %p107 = scmp.eq.s32.totalorder %s22, 1
      %p108 = por %p106, %p107
      %p110 = scmp.ne.s32.totalorder %s95, %s109
      %p111 = scmp.eq.s32.totalorder %s22, 0
      %p112 = por %p110, %p111
      %s114 = sadd.s32 %s113, 1
      %p117 = scmp.eq.s32.totalorder %s16, 1
      %p118 = scmp.ne.s32.totalorder %s113, %s115
      %p119 = scmp.eq.s32.totalorder %s16, 0
      %p120 = por %p118, %p119
      %p121 = scmp.ne.s32.totalorder %s113, %s115
      %p122 = scmp.eq.s32.totalorder %s21, 1
      %p123 = por %p121, %p122
      %p124 = scmp.ne.s32.totalorder %s115, %s116
      %p125 = scmp.eq.s32.totalorder %s21, 0
      %p126 = por %p124, %p125
      %p127 = scmp.ne.s32.totalorder %s115, %s116
      %p128 = scmp.eq.s32.totalorder %s22, 1
      %p129 = por %p127, %p128
      %p131 = scmp.ne.s32.totalorder %s116, %s130
      %p132 = scmp.eq.s32.totalorder %s22, 0
      %p133 = por %p131, %p132
      %s135 = sadd.s32 %s134, 1
      %p138 = scmp.eq.s32.totalorder %s16, 1
      %p139 = scmp.ne.s32.totalorder %s134, %s136
      %p140 = scmp.eq.s32.totalorder %s16, 0
      %p141 = por %p139, %p140
      %p142 = scmp.ne.s32.totalorder %s134, %s136
      %p143 = scmp.eq.s32.totalorder %s21, 1
      %p144 = por %p142, %p143
      %p145 = scmp.ne.s32.totalorder %s136, %s137
      %p146 = scmp.eq.s32.totalorder %s21, 0
      %p147 = por %p145, %p146
      %p148 = scmp.ne.s32.totalorder %s136, %s137
      %p149 = scmp.eq.s32.totalorder %s22, 1
      %p150 = por %p148, %p149
      %p152 = scmp.ne.s32.totalorder %s137, %s151
      %p153 = scmp.eq.s32.totalorder %s22, 0
      %p154 = por %p152, %p153
      %s156 = sadd.s32 %s155, 1
      %p159 = scmp.eq.s32.totalorder %s16, 1
      %p160 = scmp.ne.s32.totalorder %s155, %s157
      %p161 = scmp.eq.s32.totalorder %s16, 0
      %p162 = por %p160, %p161
      %p163 = scmp.ne.s32.totalorder %s155, %s157
      %p164 = scmp.eq.s32.totalorder %s21, 1
      %p165 = por %p163, %p164
      %p166 = scmp.ne.s32.totalorder %s157, %s158
      %p167 = scmp.eq.s32.totalorder %s21, 0
      %p168 = por %p166, %p167
      %p169 = scmp.ne.s32.totalorder %s157, %s158
      %p170 = scmp.eq.s32.totalorder %s22, 1
      %p171 = por %p169, %p170
      %p173 = scmp.ne.s32.totalorder %s158, %s172
      %p174 = scmp.eq.s32.totalorder %s22, 0
      %p175 = por %p173, %p174
      %s176 = ssub.s32 %s16, %s23
      %p177 = scmp.eq.s32.totalorder %s176, 0
      %s179 = sadd.s32 %s178, 1
      %s180 = scalar_select %p177, %s178, %s179
      %p183 = pneg %p177
      %p184 = scmp.eq.s32.totalorder %s16, 1
      %p185 = por %p183, %p184
      %p186 = scmp.ne.s32.totalorder %s178, %s181
      %p187 = scmp.eq.s32.totalorder %s16, 0
      %p188 = por %p186, %p187
      %p189 = scmp.ne.s32.totalorder %s178, %s181
      %p190 = scmp.eq.s32.totalorder %s21, 1
      %p191 = por %p189, %p190
      %p192 = scmp.ne.s32.totalorder %s181, %s182
      %p193 = scmp.eq.s32.totalorder %s21, 0
      %p194 = por %p192, %p193
      %p195 = scmp.ne.s32.totalorder %s181, %s182
      %p196 = scmp.eq.s32.totalorder %s22, 1
      %p197 = por %p195, %p196
      %p199 = scmp.ne.s32.totalorder %s182, %s198
      %p200 = scmp.eq.s32.totalorder %s22, 0
      %p201 = por %p199, %p200
      %p202 = scmp.le.s32.totalorder 1, %s16
      %p203 = scmp.lt.s32.totalorder %s16, 3
      %p204 = pnand %p202, %p203
      %p205 = pneg %p204
      // Predicated region
      $region9: #{tpu_custom_call.1} parent=5 // pred_check
        _
      $region10: #{tpu_custom_call.1} parent=5 // pred_check_branch
        %207 = sbr.rel (%p204) target = $region12
      $region11: #{tpu_custom_call.1} parent=5 // pred_region
        %s208 = ssub.s32 %s16, 1
        // Predicated region
        $region13: #{tpu_custom_call.1} parent=11 // pred_check
          %p209 = pneg %p63
        $region14: #{tpu_custom_call.1} parent=11 // pred_check_branch
          %211 = sbr.rel (%p209) target = $region16
        $region15: #{tpu_custom_call.1} parent=11 // pred_region
          _
        $region16: #{tpu_custom_call.1} parent=11 // pred_fallthru
          _
        // Predicated region
        $region17: #{tpu_custom_call.1} parent=11 // pred_check
          %p212 = pneg %p84
        $region18: #{tpu_custom_call.1} parent=11 // pred_check_branch
          %214 = sbr.rel (%p212) target = $region20
        $region19: #{tpu_custom_call.1} parent=11 // pred_region
          _
        $region20: #{tpu_custom_call.1} parent=11 // pred_fallthru
          _
        // Predicated region
        $region21: #{tpu_custom_call.1} parent=11 // pred_check
          %p215 = pneg %p105
        $region22: #{tpu_custom_call.1} parent=11 // pred_check_branch
          %217 = sbr.rel (%p215) target = $region24
        $region23: #{tpu_custom_call.1} parent=11 // pred_region
          _
        $region24: #{tpu_custom_call.1} parent=11 // pred_fallthru
          _
        // Predicated region
        $region25: #{tpu_custom_call.1} parent=11 // pred_check
          %p218 = pneg %p126
        $region26: #{tpu_custom_call.1} parent=11 // pred_check_branch
          %220 = sbr.rel (%p218) target = $region28
        $region27: #{tpu_custom_call.1} parent=11 // pred_region
          _
        $region28: #{tpu_custom_call.1} parent=11 // pred_fallthru
          _
        // Predicated region
        $region29: #{tpu_custom_call.1} parent=11 // pred_check
          %p221 = pneg %p147
        $region30: #{tpu_custom_call.1} parent=11 // pred_check_branch
          %223 = sbr.rel (%p221) target = $region32
        $region31: #{tpu_custom_call.1} parent=11 // pred_region
          _
        $region32: #{tpu_custom_call.1} parent=11 // pred_fallthru
          _
        // Predicated region
        $region33: #{tpu_custom_call.1} parent=11 // pred_check
          %p224 = pneg %p168
        $region34: #{tpu_custom_call.1} parent=11 // pred_check_branch
          %226 = sbr.rel (%p224) target = $region36
        $region35: #{tpu_custom_call.1} parent=11 // pred_region
          _
        $region36: #{tpu_custom_call.1} parent=11 // pred_fallthru
          _
      $region12: #{tpu_custom_call.1} parent=5 // pred_fallthru
        _
      %p227 = scmp.lt.s32.totalorder %s16, 2
      // Predicated region
      $region37: #{tpu_custom_call.1} parent=5 // pred_check
        %p228 = pneg %p227
      $region38: #{tpu_custom_call.1} parent=5 // pred_check_branch
        %230 = sbr.rel (%p228) target = $region40
      $region39: #{tpu_custom_call.1} parent=5 // pred_region
        // Predicated region
        $region41: #{tpu_custom_call.1} parent=39 // pred_check
          %p231 = pneg %p36
        $region42: #{tpu_custom_call.1} parent=39 // pred_check_branch
          %233 = sbr.rel (%p231) target = $region44
        $region43: #{tpu_custom_call.1} parent=39 // pred_region
          %p234 = scmp.lt.s32.totalorder %s16, 1
          %s235 = scalar_select %p234, %s16, 1
          %s236 = smul.addr %s235, 4
          %s237 = scalar_lea.vmem %s0, %s236
        $region44: #{tpu_custom_call.1} parent=39 // pred_fallthru
          _
      $region40: #{tpu_custom_call.1} parent=5 // pred_fallthru
        _
      %p238 = scmp.le.s32.totalorder 1, %s16
      %p239 = scmp.lt.s32.totalorder %s16, 3
      %p240 = pnand %p238, %p239
      %p241 = pneg %p240
      // Predicated region
      $region45: #{tpu_custom_call.1} parent=5 // pred_check
        _
      $region46: #{tpu_custom_call.1} parent=5 // pred_check_branch
        %243 = sbr.rel (%p240) target = $region48
      $region47: #{tpu_custom_call.1} parent=5 // pred_region
        %s244 = ssub.s32 %s16, 1
        %p245 = scmp.lt.s32.totalorder %s21, 1
        %s246 = scalar_select %p245, %s21, 1
        %s247 = smul.addr %s246, 4
        %s248 = scalar_lea.vmem %s0, %s247
        %p249 = pneg %p42
        %p250 = pneg %p39
        %p251 = pneg %p63
        %p252 = pneg %p60
        %p253 = pneg %p84
        %p254 = pneg %p81
        %p255 = pneg %p105
        %p256 = pneg %p102
        %p257 = pneg %p126
        %p258 = pneg %p123
        %p259 = pneg %p147
        %p260 = pneg %p144
        %p261 = pneg %p168
        %p262 = pneg %p165
        %p263 = pneg %p194
        %p264 = pneg %p191
        %s265 = sand.u32 %s181, 1
        %s266 = scalar_lea.sflag [#allocation3], %s265
        %s267 = sand.u32 %s181, 1
        %s268 = smul.addr %s267, 8
        %s269 = scalar_lea.vmem [#allocation2], %s268
        %p270 = scmp.lt.s32.totalorder %s21, 1
        %s271 = scalar_select %p270, %s21, 1
        %s272 = smul.addr %s271, 4
        %s273 = scalar_lea.vmem %s0, %s272
        %v275 = vld [vmem:[%s273] sm:$0xf]
        %v276 = vld [vmem:[%s1] sm:$0xf]
        %v277 = vld [vmem:[%s2] sm:$0x1]
        %v279 = vperm.slane %v277, 0
        %vm281 = vcmask 64512
        %v283 = vsel %vm281, %v275, 0
        %vm285 = vcmask 1043456
        %v287 = vsel %vm285, %v276, 0
        %289 = vmatpush.bf16.msra.mxu0 0
        %290 = vmatpush.bf16.msra.mxu0 0
        %291 = vmatpush.bf16.msra.mxu0 0
        %292 = vmatpush.bf16.msra.mxu0 0
        %293 = vmatpush.bf16.msra.mxu0 0
        %294 = vmatpush.bf16.msra.mxu0 0
        %295 = vmatpush.bf16.msra.mxu0 0
        %296 = vmatpush.bf16.msra.mxu0 %v287
        %297 = vmatmul.bf16.gmra.mxu0 %v283
        %v298 = vpop.f32.mrf.mxu0
        %v299 = vadd.f32 %v279, %v298
        %v300 = vpop.f32.mrf.mxu0
        %301 = vdwg.mxu0
        %v302 = vmax.f32 %v299, 0.0
        %v303 = vpack.c.bf16 %v302, %v302
        %v304 = vld [vmem:[%s3] sm:$0xf]
        %v305 = vld [vmem:[%s3 + $0x4] sm:$0xf]
        %v306 = vld [vmem:[%s3 + $0x8] sm:$0xf]
        %v307 = vld [vmem:[%s3 + $0xc] sm:$0xf]
        %v308 = vld [vmem:[%s3 + $0x10] sm:$0xf]
        %v309 = vld [vmem:[%s3 + $0x14] sm:$0xf]
        %v310 = vld [vmem:[%s3 + $0x18] sm:$0xf]
        %v311 = vld [vmem:[%s3 + $0x1c] sm:$0xf]
        %v312 = vld [vmem:[%s3 + $0x20] sm:$0xf]
        %v313 = vld [vmem:[%s3 + $0x24] sm:$0xf]
        %v314 = vld [vmem:[%s3 + $0x28] sm:$0xf]
        %v315 = vld [vmem:[%s3 + $0x2c] sm:$0xf]
        %v316 = vld [vmem:[%s3 + $0x30] sm:$0xf]
        %v317 = vld [vmem:[%s3 + $0x34] sm:$0xf]
        %v318 = vld [vmem:[%s3 + $0x38] sm:$0xf]
        %v319 = vld [vmem:[%s3 + $0x3c] sm:$0xf]
        %v320 = vld [vmem:[%s4] sm:$0x1]
        %v322 = vperm.slane %v320, 0
        %v340 = vunpack.c.l.b16 %v304
        %v341 = vunpack.c.l.b16 %v305
        %v342 = vunpack.c.l.b16 %v306
        %v343 = vunpack.c.l.b16 %v307
        %v344 = vunpack.c.l.b16 %v308
        %v345 = vunpack.c.l.b16 %v309
        %v346 = vunpack.c.l.b16 %v310
        %v347 = vunpack.c.l.b16 %v311
        %v348 = vunpack.c.l.b16 %v312
        %v349 = vunpack.c.l.b16 %v313
        %v350 = vunpack.c.l.b16 %v314
        %v351 = vunpack.c.l.b16 %v315
        %v352 = vunpack.c.l.b16 %v316
        %v353 = vunpack.c.l.b16 %v317
        %v354 = vunpack.c.l.b16 %v318
        %v355 = vunpack.c.l.b16 %v319
        %v356 = vpack.c.b16 %v341, %v340
        %v357 = vpack.c.b16 %v343, %v342
        %v358 = vpack.c.b16 %v345, %v344
        %v359 = vpack.c.b16 %v347, %v346
        %v360 = vpack.c.b16 %v349, %v348
        %v361 = vpack.c.b16 %v351, %v350
        %v362 = vpack.c.b16 %v353, %v352
        %v363 = vpack.c.b16 %v355, %v354
        %372 = vmatpush.bf16.msra.mxu0 %v363
        %373 = vmatpush.bf16.msra.mxu0 %v362
        %374 = vmatpush.bf16.msra.mxu0 %v361
        %375 = vmatpush.bf16.msra.mxu0 %v360
        %376 = vmatpush.bf16.msra.mxu0 %v359
        %377 = vmatpush.bf16.msra.mxu0 %v358
        %378 = vmatpush.bf16.msra.mxu0 %v357
        %379 = vmatpush.bf16.msra.mxu0 %v356
        %380 = vmatmul.bf16.gmra.mxu0 %v303
        %v381 = vpop.f32.mrf.mxu0
        %v382 = vadd.f32 %v322, %v381
        %v383 = vpop.f32.mrf.mxu0
        %384 = vdwg.mxu0
        %v385 = vmax.f32 %v382, 0.0
        %v386 = vpack.c.bf16 %v385, %v385
        %v387 = vld [vmem:[%s5] sm:$0xf]
        %v388 = vld [vmem:[%s5 + $0x4] sm:$0xf]
        %v389 = vld [vmem:[%s5 + $0x8] sm:$0xf]
        %v390 = vld [vmem:[%s5 + $0xc] sm:$0xf]
        %v391 = vld [vmem:[%s5 + $0x10] sm:$0xf]
        %v392 = vld [vmem:[%s5 + $0x14] sm:$0xf]
        %v393 = vld [vmem:[%s5 + $0x18] sm:$0xf]
        %v394 = vld [vmem:[%s5 + $0x1c] sm:$0xf]
        %v395 = vld [vmem:[%s5 + $0x20] sm:$0xf]
        %v396 = vld [vmem:[%s5 + $0x24] sm:$0xf]
        %v397 = vld [vmem:[%s5 + $0x28] sm:$0xf]
        %v398 = vld [vmem:[%s5 + $0x2c] sm:$0xf]
        %v399 = vld [vmem:[%s5 + $0x30] sm:$0xf]
        %v400 = vld [vmem:[%s5 + $0x34] sm:$0xf]
        %v401 = vld [vmem:[%s5 + $0x38] sm:$0xf]
        %v402 = vld [vmem:[%s5 + $0x3c] sm:$0xf]
        %v403 = vld [vmem:[%s6] sm:$0x1]
        %v405 = vperm.slane %v403, 0
        %v423 = vunpack.c.l.b16 %v387
        %v424 = vunpack.c.l.b16 %v388
        %v425 = vunpack.c.l.b16 %v389
        %v426 = vunpack.c.l.b16 %v390
        %v427 = vunpack.c.l.b16 %v391
        %v428 = vunpack.c.l.b16 %v392
        %v429 = vunpack.c.l.b16 %v393
        %v430 = vunpack.c.l.b16 %v394
        %v431 = vunpack.c.l.b16 %v395
        %v432 = vunpack.c.l.b16 %v396
        %v433 = vunpack.c.l.b16 %v397
        %v434 = vunpack.c.l.b16 %v398
        %v435 = vunpack.c.l.b16 %v399
        %v436 = vunpack.c.l.b16 %v400
        %v437 = vunpack.c.l.b16 %v401
        %v438 = vunpack.c.l.b16 %v402
        %v439 = vpack.c.b16 %v424, %v423
        %v440 = vpack.c.b16 %v426, %v425
        %v441 = vpack.c.b16 %v428, %v427
        %v442 = vpack.c.b16 %v430, %v429
        %v443 = vpack.c.b16 %v432, %v431
        %v444 = vpack.c.b16 %v434, %v433
        %v445 = vpack.c.b16 %v436, %v435
        %v446 = vpack.c.b16 %v438, %v437
        %455 = vmatpush.bf16.msra.mxu0 %v446
        %456 = vmatpush.bf16.msra.mxu0 %v445
        %457 = vmatpush.bf16.msra.mxu0 %v444
        %458 = vmatpush.bf16.msra.mxu0 %v443
        %459 = vmatpush.bf16.msra.mxu0 %v442
        %460 = vmatpush.bf16.msra.mxu0 %v441
        %461 = vmatpush.bf16.msra.mxu0 %v440
        %462 = vmatpush.bf16.msra.mxu0 %v439
        %463 = vmatmul.bf16.gmra.mxu0 %v386
        %v464 = vpop.f32.mrf.mxu0
        %v465 = vadd.f32 %v405, %v464
        %v466 = vpop.f32.mrf.mxu0
        %467 = vdwg.mxu0
        %vm468 = vcmask 130048
        %469 = vst.msk [vmem:[%s269] sm:$0xff] %vm468, %v465
        %s470 = sand.u32 %s181, 1
        %s471 = scalar_lea.sflag [#allocation3], %s470
        %s472 = sand.u32 %s181, 1
        %s473 = smul.addr %s472, 8
        %s474 = scalar_lea.vmem [#allocation2], %s473
        // Predicated region
        $region49: #{tpu_custom_call.1} parent=47 // pred_check
          %p475 = pneg %p191
        $region50: #{tpu_custom_call.1} parent=47 // pred_check_branch
          %477 = sbr.rel (%p475) target = $region52
        $region51: #{tpu_custom_call.1} parent=47 // pred_region
          %479 = vsyncadd %s471, 0
          %s480 = smul.addr %s21, 8
          %s481 = scalar_lea.hbm %s7, %s480
          %s483 = sshll.u32 %s474, 4
          %s484 = int_to_ptr.vmem [resolvable:$true] %s483
          %s485 = sshll.u32 %s481, 4
          %s486 = int_to_ptr.hbm [resolvable:$true] %s485
          %488 = dma.vmem_to_hbm [thread:$0]  %s484, 128, %s486, %s471
        $region52: #{tpu_custom_call.1} parent=47 // pred_fallthru
          _
      $region48: #{tpu_custom_call.1} parent=5 // pred_fallthru
        _
      %p489 = scmp.le.s32.totalorder 2, %s16
      // Predicated region
      $region53: #{tpu_custom_call.1} parent=5 // pred_check
        %p490 = pneg %p489
      $region54: #{tpu_custom_call.1} parent=5 // pred_check_branch
        %492 = sbr.rel (%p490) target = $region56
      $region55: #{tpu_custom_call.1} parent=5 // pred_region
        %s493 = ssub.s32 %s16, 2
        // Predicated region
        $region57: #{tpu_custom_call.1} parent=55 // pred_check
          %p494 = pneg %p197
        $region58: #{tpu_custom_call.1} parent=55 // pred_check_branch
          %496 = sbr.rel (%p494) target = $region60
        $region59: #{tpu_custom_call.1} parent=55 // pred_region
          %s497 = sand.u32 %s182, 1
          %s498 = scalar_lea.sflag [#allocation3], %s497
          %s499 = sand.u32 %s182, 1
          %s500 = smul.addr %s499, 8
          %s501 = scalar_lea.vmem [#allocation2], %s500
          %503 = dma.done %s498, 128
        $region60: #{tpu_custom_call.1} parent=55 // pred_fallthru
          _
      $region56: #{tpu_custom_call.1} parent=5 // pred_fallthru
        _
    $region6: #{tpu_custom_call.1} parent=1 // loop_footer
      %s20 = sadd.s32 1, %s16
    $region7: #{tpu_custom_call.1} parent=1 // loop_footer_branch
      %15 = sbr.rel target = $region3
    $region8: #{tpu_custom_call.1} parent=1 // loop_exit
      _
    %504 = vsyncpa [#allocation3], 1
    %s505 = scalar_lea.sflag [#allocation3], 1
    %506 = vsyncpa %s505, 1

</llo_original>
